<compile_context>
chip_gen: v6e
topology: v6e:2x2x1
jax: 0.10.0
libtpu: 0.0.40
codegen_flags: <defaults>
</compile_context>

<pallas_src>
import functools

import jax
import jax.numpy as jnp
from jax import lax
from jax.experimental import pallas as pl
from jax.experimental.pallas import tpu as pltpu

IN_FEATURES = 5
HIDDEN = 16
OUT_FEATURES = 1
LANE = 128
_PARAM_COLS = 8  # 5 cols W1^T + 1 col b1 + 1 col w2 + 1 col b2


def dqn_kernel(x_ref, p_ref, o_ref):
    """x_ref: [5, TB] (features x batch), p_ref: [16, 8] packed params, o_ref: [1, TB]."""
    x = x_ref[...]                                    # [5, TB]
    p = p_ref[...]                                    # [16, 8]
    w1t = p[:, 0:IN_FEATURES]                         # [16, 5]  == W1^T
    b1 = p[:, IN_FEATURES:IN_FEATURES + 1]            # [16, 1]
    w2 = p[:, IN_FEATURES + 1:IN_FEATURES + 2]        # [16, 1]
    b2 = p[0:1, IN_FEATURES + 2:IN_FEATURES + 3]      # [1, 1]

    # Layer 1 on the MXU: [16,5] @ [5,TB] -> [16,TB], f32 accumulate.
    h = jnp.dot(w1t, x, preferred_element_type=jnp.float32,
                precision=lax.Precision.HIGHEST)
    h = jnp.maximum(h + b1, 0.0)                      # bias + ReLU on the VPU

    # Layer 2 (out_features == 1): VPU multiply + XLU sublane reduce instead of a
    # [TB,16] x [16,1] matmul that would use <1% of the MXU.
    out = jnp.sum(h * w2, axis=0, keepdims=True) + b2  # [1, TB], lane-dense
    o_ref[...] = out.astype(o_ref.dtype)


def _round_up(n, m):
    return ((n + m - 1) // m) * m


def _pack_params(w1, b1, w2, b2):
    """Pack params (y = x @ w1 + b1 convention) into one [16, 8] f32 slab."""
    slab = jnp.zeros((HIDDEN, _PARAM_COLS), jnp.float32)
    slab = slab.at[:, 0:IN_FEATURES].set(jnp.asarray(w1, jnp.float32).T)
    slab = slab.at[:, IN_FEATURES].set(jnp.asarray(b1, jnp.float32).reshape(HIDDEN))
    slab = slab.at[:, IN_FEATURES + 1].set(jnp.asarray(w2, jnp.float32).reshape(HIDDEN))
    slab = slab.at[0, IN_FEATURES + 2].set(jnp.asarray(b2, jnp.float32).reshape(()))
    return slab


@functools.partial(jax.jit, static_argnames=("tile_b",))
def dq_network_forward(x, w1, b1, w2, b2, *, tile_b=512):
    """Forward pass of DQNetwork. x: [B, 5] -> [B, 1]."""
    B = x.shape[0]
    assert x.shape[1] == IN_FEATURES

    # Tile size on the lane (batch) axis: one tile for small batches, 512-lane
    # tiles for large batches (mem-bound workload; large tiles keep the ~0.35us
    # per-step pipeline overhead small while staying tiny vs. VMEM on v7x).
    if B <= tile_b:
        tb = max(LANE, _round_up(B, LANE))
    else:
        tb = tile_b
    b_pad = _round_up(B, tb)
    num_tiles = b_pad // tb

    # Batch on lanes: [5, B_pad]; zero padding rows are sliced off at the end.
    xt = jnp.zeros((IN_FEATURES, b_pad), jnp.float32)
    xt = xt.at[:, :B].set(jnp.asarray(x, jnp.float32).T)

    slab = _pack_params(w1, b1, w2, b2)

    out_shape = jax.ShapeDtypeStruct((OUT_FEATURES, b_pad), jnp.float32)
    cost = pl.CostEstimate(
        flops=b_pad * (2 * IN_FEATURES * HIDDEN + 3 * HIDDEN + 1),
        transcendentals=0,
        bytes_accessed=(xt.size + slab.size + b_pad * OUT_FEATURES) * 4,
    )

    if num_tiles == 1:
        # Grid-less call: whole arrays as single VMEM blocks, no pipeline loop.
        out = pl.pallas_call(
            dqn_kernel,
            out_shape=out_shape,
            in_specs=[
                pl.BlockSpec(memory_space=pltpu.MemorySpace.VMEM),
                pl.BlockSpec(memory_space=pltpu.MemorySpace.VMEM),
            ],
            out_specs=pl.BlockSpec(memory_space=pltpu.MemorySpace.VMEM),
            cost_estimate=cost,
        )(xt, slab)
    else:
        # Batch-tiled pipeline: x / out stream along the lane axis, the packed
        # parameter slab stays resident (constant index_map).  "parallel" lets the
        # batch axis shard across TensorCores on megacore parts (v7x).
        out = pl.pallas_call(
            dqn_kernel,
            out_shape=out_shape,
            grid=(num_tiles,),
            in_specs=[
                pl.BlockSpec((IN_FEATURES, tb), lambda i: (0, i)),
                pl.BlockSpec((HIDDEN, _PARAM_COLS), lambda i: (0, 0)),
            ],
            out_specs=pl.BlockSpec((OUT_FEATURES, tb), lambda i: (0, i)),
            compiler_params=pltpu.CompilerParams(
                dimension_semantics=("parallel",),
            ),
            cost_estimate=cost,
        )(xt, slab)

    return out[0, :B].reshape(B, OUT_FEATURES)


def init_params(key):
    """PyTorch nn.Linear default init (uniform +/- 1/sqrt(fan_in)); y = x @ w + b."""
    k1, k2, k3, k4 = jax.random.split(key, 4)
    bound1 = 1.0 / jnp.sqrt(jnp.float32(IN_FEATURES))
    bound2 = 1.0 / jnp.sqrt(jnp.float32(HIDDEN))
    w1 = jax.random.uniform(k1, (IN_FEATURES, HIDDEN), jnp.float32, -bound1, bound1)
    b1 = jax.random.uniform(k2, (HIDDEN,), jnp.float32, -bound1, bound1)
    w2 = jax.random.uniform(k3, (HIDDEN, OUT_FEATURES), jnp.float32, -bound2, bound2)
    b2 = jax.random.uniform(k4, (OUT_FEATURES,), jnp.float32, -bound2, bound2)
    return w1, b1, w2, b2


def reference_forward(x, w1, b1, w2, b2):
    h = jnp.maximum(jnp.dot(x, w1, precision=lax.Precision.HIGHEST) + b1, 0.0)
    return jnp.dot(h, w2, precision=lax.Precision.HIGHEST) + b2


if __name__ == "__main__":
    key = jax.random.PRNGKey(0)
    kx1, kx2, kp = jax.random.split(key, 3)
    w1, b1, w2, b2 = init_params(kp)

    # Small batch -> single-tile, grid-less path.
    x_small = jax.random.normal(kx1, (8, IN_FEATURES), jnp.float32)
    out_small = jax.block_until_ready(dq_network_forward(x_small, w1, b1, w2, b2))
    ref_small = reference_forward(x_small, w1, b1, w2, b2)
    assert out_small.shape == (8, OUT_FEATURES)
    assert jnp.allclose(out_small, ref_small, atol=1e-4, rtol=1e-4), \
        float(jnp.max(jnp.abs(out_small - ref_small)))

    # Larger batch -> batch-tiled "parallel" grid path (3 tiles of 128 lanes).
    x_big = jax.random.normal(kx2, (300, IN_FEATURES), jnp.float32)
    out_big = jax.block_until_ready(
        dq_network_forward(x_big, w1, b1, w2, b2, tile_b=128))
    ref_big = reference_forward(x_big, w1, b1, w2, b2)
    assert out_big.shape == (300, OUT_FEATURES)
    assert jnp.allclose(out_big, ref_big, atol=1e-4, rtol=1e-4), \
        float(jnp.max(jnp.abs(out_big - ref_big)))

    print("KERNEL_OK")
</pallas_src>

<mosaic_0001>
module attributes {stable_mosaic.version = 11 : i64} {
  func.func @dqn_kernel(%arg0: memref<5x128xf32, #tpu.memory_space<vmem>>, %arg1: memref<16x8xf32, #tpu.memory_space<vmem>>, %arg2: memref<1x128xf32, #tpu.memory_space<vmem>>) attributes {dimension_semantics = [], scalar_prefetch = 0 : i64, scratch_operands = 0 : i64, tpu.core_type = #tpu.core_type<tc>} {
    %c0 = arith.constant 0 : index
    %c0_0 = arith.constant 0 : index
    %0 = vector.load %arg0[%c0, %c0_0] : memref<5x128xf32, #tpu.memory_space<vmem>>, vector<5x128xf32>
    %c0_1 = arith.constant 0 : index
    %c0_2 = arith.constant 0 : index
    %1 = vector.load %arg1[%c0_1, %c0_2] : memref<16x8xf32, #tpu.memory_space<vmem>>, vector<16x8xf32>
    %2 = vector.extract_strided_slice %1 {offsets = [0, 0], sizes = [16, 5], strides = [1, 1]} : vector<16x8xf32> to vector<16x5xf32>
    %3 = vector.extract_strided_slice %1 {offsets = [0, 5], sizes = [16, 1], strides = [1, 1]} : vector<16x8xf32> to vector<16x1xf32>
    %4 = vector.extract_strided_slice %1 {offsets = [0, 6], sizes = [16, 1], strides = [1, 1]} : vector<16x8xf32> to vector<16x1xf32>
    %5 = vector.extract_strided_slice %1 {offsets = [0, 7], sizes = [1, 1], strides = [1, 1]} : vector<16x8xf32> to vector<1x1xf32>
    %cst = arith.constant dense<0.000000e+00> : vector<16x128xf32>
    %6 = tpu.matmul %2, %0, %cst {dimension_numbers = #tpu.dot_dimension_numbers<[1], [0], [0], [1], [0, 0, 1, 1], [], []>, precision = #tpu.contract_precision<fp32>} : vector<16x5xf32>, vector<5x128xf32>, vector<16x128xf32> -> vector<16x128xf32>
    %7 = vector.broadcast %3 : vector<16x1xf32> to vector<16x128xf32>
    %8 = arith.addf %6, %7 : vector<16x128xf32>
    %cst_3 = arith.constant 0.000000e+00 : f32
    %9 = vector.broadcast %cst_3 : f32 to vector<16x128xf32>
    %10 = arith.maximumf %8, %9 : vector<16x128xf32>
    %11 = vector.broadcast %4 : vector<16x1xf32> to vector<16x128xf32>
    %12 = arith.mulf %10, %11 : vector<16x128xf32>
    %cst_4 = arith.constant dense<0.000000e+00> : vector<128xf32>
    %13 = vector.multi_reduction <add>, %12, %cst_4 [0] : vector<16x128xf32> to vector<128xf32>
    %14 = vector.shape_cast %13 : vector<128xf32> to vector<1x128xf32>
    %15 = vector.broadcast %5 : vector<1x1xf32> to vector<1x128xf32>
    %16 = arith.addf %14, %15 : vector<1x128xf32>
    %c0_5 = arith.constant 0 : index
    %c0_6 = arith.constant 0 : index
    %17 = vector.load %arg2[%c0_5, %c0_6] : memref<1x128xf32, #tpu.memory_space<vmem>>, vector<1x128xf32>
    tpu.vector_store %arg2[%c0_5, %c0_6], %16 {strides = array<i32>} : memref<1x128xf32, #tpu.memory_space<vmem>>, vector<1x128xf32>,
    return
  }
}

</mosaic_0001>

<llo_original>
// kernel: dq_network_forward.1
$region0: #{dq_network_forward.1}
  #allocation0 [shape = 'u32[]', space=smem, size = 0x4, offset = 0x4, fixed_abs, tag = 'smem constant byte address 0x4 - core index']
  #allocation1 [shape = 'u32[144,128]{1,0:T(1,128)}', space=vmem, size = 0x12000, scoped, tag = 'internal scratch']
  %s0 = inlined_call_operand.vmem [shape: f32[5,128], index: 0, kind: input, shape index: {}]
  %s1 = inlined_call_operand.vmem [shape: f32[16,8], index: 1, kind: input, shape index: {}]
  %s2 = inlined_call_operand.vmem [shape: f32[1,128], index: 2, kind: output, shape index: {}]
  %s3 = sld [smem:[#allocation0]]
  $region18: #{dq_network_forward.1} parent=0
    _
  %s5 = ssub.s32 1, %s3
  %s6 = scalar_select 0, %s5, %s3
  // Predicated region
  $region2: #{dq_network_forward.1} parent=0 // pred_check
    _
  $region3: #{dq_network_forward.1} parent=0 // pred_check_branch
    %8 = sbr.rel (0) target = $region5
  $region4: #{dq_network_forward.1} parent=0 // pred_region
    _
  $region5: #{dq_network_forward.1} parent=0 // pred_fallthru
    _
  // Predicated region
  $region6: #{dq_network_forward.1} parent=0 // pred_check
    _
  $region7: #{dq_network_forward.1} parent=0 // pred_check_branch
    %10 = sbr.rel (0) target = $region9
  $region8: #{dq_network_forward.1} parent=0 // pred_region
    _
  $region9: #{dq_network_forward.1} parent=0 // pred_fallthru
    _
  %v11 = vld [vmem:[%s0] sm:$0x1f]
  %v12 = vld [vmem:[%s1] sm:$0xff]
  %v13 = vld [vmem:[%s1 + $0x8] sm:$0xff]
  %15 = vset.pattern.permute.xlu0 5
  %16 = vperm.xlu0 %15, %v12
  %v17 = vpop.permute.xlu0 %16
  %20 = vset.pattern.permute.xlu0 5
  %21 = vperm.xlu0 %20, %v13
  %v22 = vpop.permute.xlu0 %21
  %vm24 = vcmask 39936
  %v25 = vsel %vm24, %v12, 0
  %v27 = vsel %vm24, %v13, 0
  %vm29 = vcmask 1044480
  %v31 = vsel %vm29, %v11, 0
  %33 = vmatprep.subr.mxu0 0.0
  %34 = vmatpush1.msra.mxu0 0.0
  %35 = vmatprep.subr.mxu0 0.0
  %36 = vmatpush1.msra.mxu0 0.0
  %37 = vmatprep.subr.mxu0 0.0
  %38 = vmatpush1.msra.mxu0 0.0
  %39 = vmatprep.subr.mxu0 0.0
  %40 = vmatpush1.msra.mxu0 0.0
  %41 = vmatprep.subr.mxu0 0.0
  %42 = vmatpush1.msra.mxu0 0.0
  %43 = vmatprep.subr.mxu0 0.0
  %44 = vmatpush1.msra.mxu0 0.0
  %45 = vmatprep.subr.mxu0 0.0
  %46 = vmatpush1.msra.mxu0 0.0
  %47 = vmatprep.subr.mxu0 0.0
  %48 = vmatpush1.msra.mxu0 0.0
  %49 = vmatprep.subr.mxu0 0.0
  %50 = vmatpush1.msra.mxu0 0.0
  %51 = vmatprep.subr.mxu0 0.0
  %52 = vmatpush1.msra.mxu0 0.0
  %53 = vmatprep.subr.mxu0 0.0
  %54 = vmatpush1.msra.mxu0 0.0
  %55 = vmatprep.subr.mxu0 0.0
  %56 = vmatpush1.msra.mxu0 0.0
  %57 = vmatprep.subr.mxu0 0.0
  %58 = vmatpush1.msra.mxu0 0.0
  %59 = vmatprep.subr.mxu0 0.0
  %60 = vmatpush1.msra.mxu0 0.0
  %61 = vmatprep.subr.mxu0 0.0
  %62 = vmatpush1.msra.mxu0 0.0
  %63 = vmatprep.subr.mxu0 0.0
  %v64 = vand.u32 %v31, 4294901760
  %65 = vmatpush1.msra.mxu0 %v64
  %66 = vmatprep.subr.mxu0 0.0
  %67 = vmatpush2.msra.mxu0 0.0
  %68 = vmatprep.subr.mxu0 0.0
  %69 = vmatpush2.msra.mxu0 0.0
  %70 = vmatprep.subr.mxu0 0.0
  %71 = vmatpush2.msra.mxu0 0.0
  %72 = vmatprep.subr.mxu0 0.0
  %73 = vmatpush2.msra.mxu0 0.0
  %74 = vmatprep.subr.mxu0 0.0
  %75 = vmatpush2.msra.mxu0 0.0
  %76 = vmatprep.subr.mxu0 0.0
  %77 = vmatpush2.msra.mxu0 0.0
  %78 = vmatprep.subr.mxu0 0.0
  %79 = vmatpush2.msra.mxu0 0.0
  %80 = vmatprep.subr.mxu0 0.0
  %81 = vmatpush2.msra.mxu0 0.0
  %82 = vmatprep.subr.mxu0 0.0
  %83 = vmatpush2.msra.mxu0 0.0
  %84 = vmatprep.subr.mxu0 0.0
  %85 = vmatpush2.msra.mxu0 0.0
  %86 = vmatprep.subr.mxu0 0.0
  %87 = vmatpush2.msra.mxu0 0.0
  %88 = vmatprep.subr.mxu0 0.0
  %89 = vmatpush2.msra.mxu0 0.0
  %90 = vmatprep.subr.mxu0 0.0
  %91 = vmatpush2.msra.mxu0 0.0
  %92 = vmatprep.subr.mxu0 0.0
  %93 = vmatpush2.msra.mxu0 0.0
  %94 = vmatprep.subr.mxu0 0.0
  %95 = vmatpush2.msra.mxu0 0.0
  %96 = vmatprep.subr.mxu0 0.0
  %97 = vmatpush2.msra.mxu0 0.0
  %98 = vmatprep.mubr.f32.mxu0 0.0
  %v99 = vand.u32 %v25, 4294901760
  %v100 = vsub.f32 %v25, %v99
  %v101 = vand.u32 %v100, 4294901760
  %v102 = vsub.f32 %v100, %v101
  %v103 = vand.u32 %v102, 4294901760
  %104 = vmatmul.mubr.f32.gmra.mxu0 %v103
  %v105 = vpop.f32.mrf.mxu0
  %v106 = vadd.f32 %v17, %v105
  %v107 = vpop.f32.mrf.mxu0
  %108 = vmatprep.mubr.f32.mxu0 0.0
  %v109 = vand.u32 %v27, 4294901760
  %v110 = vsub.f32 %v27, %v109
  %v111 = vand.u32 %v110, 4294901760
  %v112 = vsub.f32 %v110, %v111
  %v113 = vand.u32 %v112, 4294901760
  %114 = vmatmul.mubr.f32.gmra.mxu0 %v113
  %v115 = vpop.f32.mrf.mxu0
  %v116 = vadd.f32 %v22, %v115
  %v117 = vpop.f32.mrf.mxu0
  %118 = vdwg.mxu0
  %119 = vmatprep.subr.mxu0 0.0
  %120 = vmatpush1.msra.mxu0 0.0
  %121 = vmatprep.subr.mxu0 0.0
  %122 = vmatpush1.msra.mxu0 0.0
  %123 = vmatprep.subr.mxu0 0.0
  %124 = vmatpush1.msra.mxu0 0.0
  %125 = vmatprep.subr.mxu0 0.0
  %126 = vmatpush1.msra.mxu0 0.0
  %127 = vmatprep.subr.mxu0 0.0
  %128 = vmatpush1.msra.mxu0 0.0
  %129 = vmatprep.subr.mxu0 0.0
  %130 = vmatpush1.msra.mxu0 0.0
  %131 = vmatprep.subr.mxu0 0.0
  %132 = vmatpush1.msra.mxu0 0.0
  %133 = vmatprep.subr.mxu0 0.0
  %134 = vmatpush1.msra.mxu0 0.0
  %135 = vmatprep.subr.mxu0 0.0
  %136 = vmatpush1.msra.mxu0 0.0
  %137 = vmatprep.subr.mxu0 0.0
  %138 = vmatpush1.msra.mxu0 0.0
  %139 = vmatprep.subr.mxu0 0.0
  %140 = vmatpush1.msra.mxu0 0.0
  %141 = vmatprep.subr.mxu0 0.0
  %142 = vmatpush1.msra.mxu0 0.0
  %143 = vmatprep.subr.mxu0 0.0
  %144 = vmatpush1.msra.mxu0 0.0
  %145 = vmatprep.subr.mxu0 0.0
  %146 = vmatpush1.msra.mxu0 0.0
  %147 = vmatprep.subr.mxu0 0.0
  %148 = vmatpush1.msra.mxu0 0.0
  %149 = vmatprep.subr.mxu0 0.0
  %v150 = vand.u32 %v31, 4294901760
  %v151 = vsub.f32 %v31, %v150
  %v152 = vand.u32 %v151, 4294901760
  %v153 = vsub.f32 %v151, %v152
  %v154 = vand.u32 %v153, 4294901760
  %155 = vmatpush1.msra.mxu0 %v154
  %156 = vmatprep.subr.mxu0 0.0
  %157 = vmatpush2.msra.mxu0 0.0
  %158 = vmatprep.subr.mxu0 0.0
  %159 = vmatpush2.msra.mxu0 0.0
  %160 = vmatprep.subr.mxu0 0.0
  %161 = vmatpush2.msra.mxu0 0.0
  %162 = vmatprep.subr.mxu0 0.0
  %163 = vmatpush2.msra.mxu0 0.0
  %164 = vmatprep.subr.mxu0 0.0
  %165 = vmatpush2.msra.mxu0 0.0
  %166 = vmatprep.subr.mxu0 0.0
  %167 = vmatpush2.msra.mxu0 0.0
  %168 = vmatprep.subr.mxu0 0.0
  %169 = vmatpush2.msra.mxu0 0.0
  %170 = vmatprep.subr.mxu0 0.0
  %171 = vmatpush2.msra.mxu0 0.0
  %172 = vmatprep.subr.mxu0 0.0
  %173 = vmatpush2.msra.mxu0 0.0
  %174 = vmatprep.subr.mxu0 0.0
  %175 = vmatpush2.msra.mxu0 0.0
  %176 = vmatprep.subr.mxu0 0.0
  %177 = vmatpush2.msra.mxu0 0.0
  %178 = vmatprep.subr.mxu0 0.0
  %179 = vmatpush2.msra.mxu0 0.0
  %180 = vmatprep.subr.mxu0 0.0
  %181 = vmatpush2.msra.mxu0 0.0
  %182 = vmatprep.subr.mxu0 0.0
  %183 = vmatpush2.msra.mxu0 0.0
  %184 = vmatprep.subr.mxu0 0.0
  %185 = vmatpush2.msra.mxu0 0.0
  %186 = vmatprep.subr.mxu0 0.0
  %187 = vmatpush2.msra.mxu0 0.0
  %188 = vmatprep.mubr.f32.mxu0 0.0
  %v189 = vand.u32 %v25, 4294901760
  %190 = vmatmul.mubr.f32.gmra.mxu0 %v189
  %v191 = vpop.f32.mrf.mxu0
  %v192 = vadd.f32 %v106, %v191
  %v193 = vpop.f32.mrf.mxu0
  %194 = vmatprep.mubr.f32.mxu0 0.0
  %v195 = vand.u32 %v27, 4294901760
  %196 = vmatmul.mubr.f32.gmra.mxu0 %v195
  %v197 = vpop.f32.mrf.mxu0
  %v198 = vadd.f32 %v116, %v197
  %v199 = vpop.f32.mrf.mxu0
  %200 = vdwg.mxu0
  %201 = vmatprep.subr.mxu0 0.0
  %202 = vmatpush1.msra.mxu0 0.0
  %203 = vmatprep.subr.mxu0 0.0
  %204 = vmatpush1.msra.mxu0 0.0
  %205 = vmatprep.subr.mxu0 0.0
  %206 = vmatpush1.msra.mxu0 0.0
  %207 = vmatprep.subr.mxu0 0.0
  %208 = vmatpush1.msra.mxu0 0.0
  %209 = vmatprep.subr.mxu0 0.0
  %210 = vmatpush1.msra.mxu0 0.0
  %211 = vmatprep.subr.mxu0 0.0
  %212 = vmatpush1.msra.mxu0 0.0
  %213 = vmatprep.subr.mxu0 0.0
  %214 = vmatpush1.msra.mxu0 0.0
  %215 = vmatprep.subr.mxu0 0.0
  %216 = vmatpush1.msra.mxu0 0.0
  %217 = vmatprep.subr.mxu0 0.0
  %218 = vmatpush1.msra.mxu0 0.0
  %219 = vmatprep.subr.mxu0 0.0
  %220 = vmatpush1.msra.mxu0 0.0
  %221 = vmatprep.subr.mxu0 0.0
  %222 = vmatpush1.msra.mxu0 0.0
  %223 = vmatprep.subr.mxu0 0.0
  %224 = vmatpush1.msra.mxu0 0.0
  %225 = vmatprep.subr.mxu0 0.0
  %226 = vmatpush1.msra.mxu0 0.0
  %227 = vmatprep.subr.mxu0 0.0
  %228 = vmatpush1.msra.mxu0 0.0
  %229 = vmatprep.subr.mxu0 0.0
  %230 = vmatpush1.msra.mxu0 0.0
  %231 = vmatprep.subr.mxu0 0.0
  %v232 = vand.u32 %v31, 4294901760
  %v233 = vsub.f32 %v31, %v232
  %234 = vmatpush1.msra.mxu0 %v233
  %235 = vmatprep.subr.mxu0 0.0
  %236 = vmatpush2.msra.mxu0 0.0
  %237 = vmatprep.subr.mxu0 0.0
  %238 = vmatpush2.msra.mxu0 0.0
  %239 = vmatprep.subr.mxu0 0.0
  %240 = vmatpush2.msra.mxu0 0.0
  %241 = vmatprep.subr.mxu0 0.0
  %242 = vmatpush2.msra.mxu0 0.0
  %243 = vmatprep.subr.mxu0 0.0
  %244 = vmatpush2.msra.mxu0 0.0
  %245 = vmatprep.subr.mxu0 0.0
  %246 = vmatpush2.msra.mxu0 0.0
  %247 = vmatprep.subr.mxu0 0.0
  %248 = vmatpush2.msra.mxu0 0.0
  %249 = vmatprep.subr.mxu0 0.0
  %250 = vmatpush2.msra.mxu0 0.0
  %251 = vmatprep.subr.mxu0 0.0
  %252 = vmatpush2.msra.mxu0 0.0
  %253 = vmatprep.subr.mxu0 0.0
  %254 = vmatpush2.msra.mxu0 0.0
  %255 = vmatprep.subr.mxu0 0.0
  %256 = vmatpush2.msra.mxu0 0.0
  %257 = vmatprep.subr.mxu0 0.0
  %258 = vmatpush2.msra.mxu0 0.0
  %259 = vmatprep.subr.mxu0 0.0
  %260 = vmatpush2.msra.mxu0 0.0
  %261 = vmatprep.subr.mxu0 0.0
  %262 = vmatpush2.msra.mxu0 0.0
  %263 = vmatprep.subr.mxu0 0.0
  %264 = vmatpush2.msra.mxu0 0.0
  %265 = vmatprep.subr.mxu0 0.0
  %266 = vmatpush2.msra.mxu0 0.0
  %267 = vmatprep.mubr.f32.mxu0 0.0
  %v268 = vand.u32 %v25, 4294901760
  %v269 = vsub.f32 %v25, %v268
  %270 = vmatmul.mubr.f32.gmra.mxu0 %v269
  %v271 = vpop.f32.mrf.mxu0
  %v272 = vadd.f32 %v192, %v271
  %v273 = vpop.f32.mrf.mxu0
  %274 = vmatprep.mubr.f32.mxu0 0.0
  %v275 = vand.u32 %v27, 4294901760
  %v276 = vsub.f32 %v27, %v275
  %277 = vmatmul.mubr.f32.gmra.mxu0 %v276
  %v278 = vpop.f32.mrf.mxu0
  %v279 = vadd.f32 %v198, %v278
  %v280 = vpop.f32.mrf.mxu0
  %281 = vdwg.mxu0
  %282 = vmatprep.subr.mxu0 0.0
  %283 = vmatpush1.msra.mxu0 0.0
  %284 = vmatprep.subr.mxu0 0.0
  %285 = vmatpush1.msra.mxu0 0.0
  %286 = vmatprep.subr.mxu0 0.0
  %287 = vmatpush1.msra.mxu0 0.0
  %288 = vmatprep.subr.mxu0 0.0
  %289 = vmatpush1.msra.mxu0 0.0
  %290 = vmatprep.subr.mxu0 0.0
  %291 = vmatpush1.msra.mxu0 0.0
  %292 = vmatprep.subr.mxu0 0.0
  %293 = vmatpush1.msra.mxu0 0.0
  %294 = vmatprep.subr.mxu0 0.0
  %295 = vmatpush1.msra.mxu0 0.0
  %296 = vmatprep.subr.mxu0 0.0
  %297 = vmatpush1.msra.mxu0 0.0
  %298 = vmatprep.subr.mxu0 0.0
  %299 = vmatpush1.msra.mxu0 0.0
  %300 = vmatprep.subr.mxu0 0.0
  %301 = vmatpush1.msra.mxu0 0.0
  %302 = vmatprep.subr.mxu0 0.0
  %303 = vmatpush1.msra.mxu0 0.0
  %304 = vmatprep.subr.mxu0 0.0
  %305 = vmatpush1.msra.mxu0 0.0
  %306 = vmatprep.subr.mxu0 0.0
  %307 = vmatpush1.msra.mxu0 0.0
  %308 = vmatprep.subr.mxu0 0.0
  %309 = vmatpush1.msra.mxu0 0.0
  %310 = vmatprep.subr.mxu0 0.0
  %311 = vmatpush1.msra.mxu0 0.0
  %312 = vmatprep.subr.mxu0 0.0
  %v313 = vand.u32 %v31, 4294901760
  %314 = vmatpush1.msra.mxu0 %v313
  %315 = vmatprep.subr.mxu0 0.0
  %316 = vmatpush2.msra.mxu0 0.0
  %317 = vmatprep.subr.mxu0 0.0
  %318 = vmatpush2.msra.mxu0 0.0
  %319 = vmatprep.subr.mxu0 0.0
  %320 = vmatpush2.msra.mxu0 0.0
  %321 = vmatprep.subr.mxu0 0.0
  %322 = vmatpush2.msra.mxu0 0.0
  %323 = vmatprep.subr.mxu0 0.0
  %324 = vmatpush2.msra.mxu0 0.0
  %325 = vmatprep.subr.mxu0 0.0
  %326 = vmatpush2.msra.mxu0 0.0
  %327 = vmatprep.subr.mxu0 0.0
  %328 = vmatpush2.msra.mxu0 0.0
  %329 = vmatprep.subr.mxu0 0.0
  %330 = vmatpush2.msra.mxu0 0.0
  %331 = vmatprep.subr.mxu0 0.0
  %332 = vmatpush2.msra.mxu0 0.0
  %333 = vmatprep.subr.mxu0 0.0
  %334 = vmatpush2.msra.mxu0 0.0
  %335 = vmatprep.subr.mxu0 0.0
  %336 = vmatpush2.msra.mxu0 0.0
  %337 = vmatprep.subr.mxu0 0.0
  %338 = vmatpush2.msra.mxu0 0.0
  %339 = vmatprep.subr.mxu0 0.0
  %340 = vmatpush2.msra.mxu0 0.0
  %341 = vmatprep.subr.mxu0 0.0
  %342 = vmatpush2.msra.mxu0 0.0
  %343 = vmatprep.subr.mxu0 0.0
  %344 = vmatpush2.msra.mxu0 0.0
  %345 = vmatprep.subr.mxu0 0.0
  %346 = vmatpush2.msra.mxu0 0.0
  %347 = vmatprep.mubr.f32.mxu0 0.0
  %v348 = vand.u32 %v25, 4294901760
  %v349 = vsub.f32 %v25, %v348
  %v350 = vand.u32 %v349, 4294901760
  %351 = vmatmul.mubr.f32.gmra.mxu0 %v350
  %v352 = vpop.f32.mrf.mxu0
  %v353 = vadd.f32 %v272, %v352
  %v354 = vpop.f32.mrf.mxu0
  %355 = vmatprep.mubr.f32.mxu0 0.0
  %v356 = vand.u32 %v27, 4294901760
  %v357 = vsub.f32 %v27, %v356
  %v358 = vand.u32 %v357, 4294901760
  %359 = vmatmul.mubr.f32.gmra.mxu0 %v358
  %v360 = vpop.f32.mrf.mxu0
  %v361 = vadd.f32 %v279, %v360
  %v362 = vpop.f32.mrf.mxu0
  %363 = vdwg.mxu0
  %364 = vmatprep.subr.mxu0 0.0
  %365 = vmatpush1.msra.mxu0 0.0
  %366 = vmatprep.subr.mxu0 0.0
  %367 = vmatpush1.msra.mxu0 0.0
  %368 = vmatprep.subr.mxu0 0.0
  %369 = vmatpush1.msra.mxu0 0.0
  %370 = vmatprep.subr.mxu0 0.0
  %371 = vmatpush1.msra.mxu0 0.0
  %372 = vmatprep.subr.mxu0 0.0
  %373 = vmatpush1.msra.mxu0 0.0
  %374 = vmatprep.subr.mxu0 0.0
  %375 = vmatpush1.msra.mxu0 0.0
  %376 = vmatprep.subr.mxu0 0.0
  %377 = vmatpush1.msra.mxu0 0.0
  %378 = vmatprep.subr.mxu0 0.0
  %379 = vmatpush1.msra.mxu0 0.0
  %380 = vmatprep.subr.mxu0 0.0
  %381 = vmatpush1.msra.mxu0 0.0
  %382 = vmatprep.subr.mxu0 0.0
  %383 = vmatpush1.msra.mxu0 0.0
  %384 = vmatprep.subr.mxu0 0.0
  %385 = vmatpush1.msra.mxu0 0.0
  %386 = vmatprep.subr.mxu0 0.0
  %387 = vmatpush1.msra.mxu0 0.0
  %388 = vmatprep.subr.mxu0 0.0
  %389 = vmatpush1.msra.mxu0 0.0
  %390 = vmatprep.subr.mxu0 0.0
  %391 = vmatpush1.msra.mxu0 0.0
  %392 = vmatprep.subr.mxu0 0.0
  %393 = vmatpush1.msra.mxu0 0.0
  %394 = vmatprep.subr.mxu0 0.0
  %v395 = vand.u32 %v31, 4294901760
  %v396 = vsub.f32 %v31, %v395
  %v397 = vand.u32 %v396, 4294901760
  %398 = vmatpush1.msra.mxu0 %v397
  %399 = vmatprep.subr.mxu0 0.0
  %400 = vmatpush2.msra.mxu0 0.0
  %401 = vmatprep.subr.mxu0 0.0
  %402 = vmatpush2.msra.mxu0 0.0
  %403 = vmatprep.subr.mxu0 0.0
  %404 = vmatpush2.msra.mxu0 0.0
  %405 = vmatprep.subr.mxu0 0.0
  %406 = vmatpush2.msra.mxu0 0.0
  %407 = vmatprep.subr.mxu0 0.0
  %408 = vmatpush2.msra.mxu0 0.0
  %409 = vmatprep.subr.mxu0 0.0
  %410 = vmatpush2.msra.mxu0 0.0
  %411 = vmatprep.subr.mxu0 0.0
  %412 = vmatpush2.msra.mxu0 0.0
  %413 = vmatprep.subr.mxu0 0.0
  %414 = vmatpush2.msra.mxu0 0.0
  %415 = vmatprep.subr.mxu0 0.0
  %416 = vmatpush2.msra.mxu0 0.0
  %417 = vmatprep.subr.mxu0 0.0
  %418 = vmatpush2.msra.mxu0 0.0
  %419 = vmatprep.subr.mxu0 0.0
  %420 = vmatpush2.msra.mxu0 0.0
  %421 = vmatprep.subr.mxu0 0.0
  %422 = vmatpush2.msra.mxu0 0.0
  %423 = vmatprep.subr.mxu0 0.0
  %424 = vmatpush2.msra.mxu0 0.0
  %425 = vmatprep.subr.mxu0 0.0
  %426 = vmatpush2.msra.mxu0 0.0
  %427 = vmatprep.subr.mxu0 0.0
  %428 = vmatpush2.msra.mxu0 0.0
  %429 = vmatprep.subr.mxu0 0.0
  %430 = vmatpush2.msra.mxu0 0.0
  %431 = vmatprep.mubr.f32.mxu0 0.0
  %v432 = vand.u32 %v25, 4294901760
  %433 = vmatmul.mubr.f32.gmra.mxu0 %v432
  %v434 = vpop.f32.mrf.mxu0
  %v435 = vadd.f32 %v353, %v434
  %v436 = vpop.f32.mrf.mxu0
  %437 = vmatprep.mubr.f32.mxu0 0.0
  %v438 = vand.u32 %v27, 4294901760
  %439 = vmatmul.mubr.f32.gmra.mxu0 %v438
  %v440 = vpop.f32.mrf.mxu0
  %v441 = vadd.f32 %v361, %v440
  %v442 = vpop.f32.mrf.mxu0
  %443 = vdwg.mxu0
  %444 = vmatprep.subr.mxu0 0.0
  %445 = vmatpush1.msra.mxu0 0.0
  %446 = vmatprep.subr.mxu0 0.0
  %447 = vmatpush1.msra.mxu0 0.0
  %448 = vmatprep.subr.mxu0 0.0
  %449 = vmatpush1.msra.mxu0 0.0
  %450 = vmatprep.subr.mxu0 0.0
  %451 = vmatpush1.msra.mxu0 0.0
  %452 = vmatprep.subr.mxu0 0.0
  %453 = vmatpush1.msra.mxu0 0.0
  %454 = vmatprep.subr.mxu0 0.0
  %455 = vmatpush1.msra.mxu0 0.0
  %456 = vmatprep.subr.mxu0 0.0
  %457 = vmatpush1.msra.mxu0 0.0
  %458 = vmatprep.subr.mxu0 0.0
  %459 = vmatpush1.msra.mxu0 0.0
  %460 = vmatprep.subr.mxu0 0.0
  %461 = vmatpush1.msra.mxu0 0.0
  %462 = vmatprep.subr.mxu0 0.0
  %463 = vmatpush1.msra.mxu0 0.0
  %464 = vmatprep.subr.mxu0 0.0
  %465 = vmatpush1.msra.mxu0 0.0
  %466 = vmatprep.subr.mxu0 0.0
  %467 = vmatpush1.msra.mxu0 0.0
  %468 = vmatprep.subr.mxu0 0.0
  %469 = vmatpush1.msra.mxu0 0.0
  %470 = vmatprep.subr.mxu0 0.0
  %471 = vmatpush1.msra.mxu0 0.0
  %472 = vmatprep.subr.mxu0 0.0
  %473 = vmatpush1.msra.mxu0 0.0
  %474 = vmatprep.subr.mxu0 0.0
  %v475 = vand.u32 %v31, 4294901760
  %476 = vmatpush1.msra.mxu0 %v475
  %477 = vmatprep.subr.mxu0 0.0
  %478 = vmatpush2.msra.mxu0 0.0
  %479 = vmatprep.subr.mxu0 0.0
  %480 = vmatpush2.msra.mxu0 0.0
  %481 = vmatprep.subr.mxu0 0.0
  %482 = vmatpush2.msra.mxu0 0.0
  %483 = vmatprep.subr.mxu0 0.0
  %484 = vmatpush2.msra.mxu0 0.0
  %485 = vmatprep.subr.mxu0 0.0
  %486 = vmatpush2.msra.mxu0 0.0
  %487 = vmatprep.subr.mxu0 0.0
  %488 = vmatpush2.msra.mxu0 0.0
  %489 = vmatprep.subr.mxu0 0.0
  %490 = vmatpush2.msra.mxu0 0.0
  %491 = vmatprep.subr.mxu0 0.0
  %492 = vmatpush2.msra.mxu0 0.0
  %493 = vmatprep.subr.mxu0 0.0
  %494 = vmatpush2.msra.mxu0 0.0
  %495 = vmatprep.subr.mxu0 0.0
  %496 = vmatpush2.msra.mxu0 0.0
  %497 = vmatprep.subr.mxu0 0.0
  %498 = vmatpush2.msra.mxu0 0.0
  %499 = vmatprep.subr.mxu0 0.0
  %500 = vmatpush2.msra.mxu0 0.0
  %501 = vmatprep.subr.mxu0 0.0
  %502 = vmatpush2.msra.mxu0 0.0
  %503 = vmatprep.subr.mxu0 0.0
  %504 = vmatpush2.msra.mxu0 0.0
  %505 = vmatprep.subr.mxu0 0.0
  %506 = vmatpush2.msra.mxu0 0.0
  %507 = vmatprep.subr.mxu0 0.0
  %508 = vmatpush2.msra.mxu0 0.0
  %509 = vmatprep.mubr.f32.mxu0 0.0
  %v510 = vand.u32 %v25, 4294901760
  %511 = vmatmul.mubr.f32.gmra.mxu0 %v510
  %v512 = vpop.f32.mrf.mxu0
  %v513 = vadd.f32 %v435, %v512
  %v514 = vpop.f32.mrf.mxu0
  %515 = vmatprep.mubr.f32.mxu0 0.0
  %v516 = vand.u32 %v27, 4294901760
  %517 = vmatmul.mubr.f32.gmra.mxu0 %v516
  %v518 = vpop.f32.mrf.mxu0
  %v519 = vadd.f32 %v441, %v518
  %v520 = vpop.f32.mrf.mxu0
  %521 = vdwg.mxu0
  %v522 = vmax.f32 %v513, 0.0
  %v523 = vmax.f32 %v519, 0.0
  %524 = vset.pattern.permute.xlu0 6
  %525 = vperm.xlu0 %524, %v12
  %v526 = vpop.permute.xlu0 %525
  %528 = vset.pattern.permute.xlu0 6
  %529 = vperm.xlu0 %528, %v13
  %v530 = vpop.permute.xlu0 %529
  %v532 = vmul.f32 %v522, %v526
  %v533 = vmul.f32 %v523, %v530
  %v534 = vadd.f32 %v532, %v533
  %v535 = vrot.slane %v534, 4
  %v536 = vadd.f32 %v534, %v535
  %v537 = vrot.slane %v536, 2
  %v538 = vadd.f32 %v536, %v537
  %v539 = vrot.slane %v538, 1
  %v540 = vadd.f32 %v538, %v539
  %541 = vset.pattern.permute.xlu0 7
  %542 = vperm.xlu0 %541, %v12
  %v543 = vpop.permute.xlu0 %542
  %v545 = vadd.f32 %v540, %v543
  %546 = vst [vmem:[%s2] sm:$0x1] %v545
  // Predicated region
  $region10: #{dq_network_forward.1} parent=0 // pred_check
    _
  $region11: #{dq_network_forward.1} parent=0 // pred_check_branch
    %548 = sbr.rel (0) target = $region13
  $region12: #{dq_network_forward.1} parent=0 // pred_region
    _
  $region13: #{dq_network_forward.1} parent=0 // pred_fallthru
    _
  // Predicated region
  $region14: #{dq_network_forward.1} parent=0 // pred_check
    _
  $region15: #{dq_network_forward.1} parent=0 // pred_check_branch
    %550 = sbr.rel (0) target = $region17
  $region16: #{dq_network_forward.1} parent=0 // pred_region
    _
  $region17: #{dq_network_forward.1} parent=0 // pred_fallthru
    _

</llo_original>
